<compile_context>
chip_gen: v5e
topology: v5e:2x2
jax: 0.10.0
libtpu: 0.0.40
codegen_flags: <defaults>
</compile_context>

<pallas_src>
import jax
import jax.numpy as jnp
from jax import lax
from jax.experimental import pallas as pl
from jax.experimental.pallas import tpu as pltpu


# ----------------------------------------------------------------------------------------
# Small helpers
# ----------------------------------------------------------------------------------------
_SUBLANE_GRANULE = {1: 32, 2: 16, 4: 8}  # itemsize -> rows per packed sublane group


def _cdiv(a, b):
    return -(-a // b)


def _round_up(x, m):
    return _cdiv(x, m) * m


def _round_down(x, m):
    return (x // m) * m


def _resident_bytes(*arrs):
    # Constant-index-map weights stay VMEM-resident; count both pipeline buffers.
    return sum(2 * int(a.size) * jnp.dtype(a.dtype).itemsize for a in arrs)


def _vmem_budget_bytes():
    cap = None
    try:
        info = pltpu.get_tpu_info()
        for attr in ("vmem_capacity_bytes", "vmem_size_bytes", "vmem_bytes"):
            cap = getattr(info, attr, None)
            if cap:
                break
    except Exception:
        cap = None
    if not cap:
        cap = 64 << 20  # conservative: v7x has 64 MiB VMEM per TensorCore
    # Leave headroom for Mosaic-internal scratch: ~48 MiB on v7x, up to 96 MiB on v5e/v6e.
    return int(min(int(cap) * 3 // 4, 96 << 20))


def _pick_batch_tile(batch, row_stream_bytes, row_vmem_bytes, fixed_bytes, budget,
                     target_block_bytes, granule, max_tile=None):
    """Batch rows per grid step.

    Either tb == batch (block equals the full dim) or tb is a sublane-granule multiple, so the
    (tb, ...) block layout rule is always satisfied and ragged tails are handled by Pallas'
    masked boundary blocks (no padding copies).
    """
    tb = min(
        max(1, target_block_bytes // max(row_stream_bytes, 1)),
        max(1, (budget - fixed_bytes) // max(row_vmem_bytes, 1)),
        batch,
    )
    if max_tile is not None:
        tb = min(tb, max_tile)
    if tb >= batch:
        return batch
    tb = max(granule, _round_down(tb, granule))
    if tb >= batch:
        return batch
    # Prefer an even number of grid steps: the "parallel" batch axis shards across the two
    # TensorCores of a v7x chip; an odd count strands up to one block of work on one core.
    n = _cdiv(batch, tb)
    if n > 1 and n % 2 == 1:
        tb_even = max(granule, _round_up(_cdiv(batch, n + 1), granule))
        if tb_even < batch and tb_even <= tb and _cdiv(batch, tb_even) % 2 == 0:
            tb = tb_even
    return tb


def _pick_two_pass_tiles(batch, C, L, itemsize, granule, budget, fixed_bytes,
                         target_block_bytes, max_seq_tile=None):
    """Tiles for the two-pass fallback: small batch tile, L tiled in 128-lane multiples."""
    tb = batch if batch <= granule else granule
    lane_bytes = 5 * tb * C * itemsize            # in (x2) + out (x2) + temp, per unit of L
    small = fixed_bytes + 4 * tb * C * 4          # f32 accumulator + s blocks
    tl = min(
        L,
        max(1, (budget - small) // max(lane_bytes, 1)),
        max(1, target_block_bytes // max(tb * C * itemsize, 1)),
    )
    if max_seq_tile is not None:
        tl = min(tl, max_seq_tile)
    if tl < L:
        if L >= 128:
            tl = max(128, _round_down(tl, 128))
            # TODO(synk): tile C as well for extreme C where even a (tb, C, 128) slab overflows VMEM.
        else:
            tl = L
    return tb, min(tl, L)


# ----------------------------------------------------------------------------------------
# Kernels
# ----------------------------------------------------------------------------------------
def _se_kernel_2d(x_ref, a_ref, w2t_ref, e_ref, o_ref):
    """Lane-dense path: x flattened to (tb, C*L).

    a_ref  : (C*L, H) == repeat(W1^T, L, axis=0) / L  (avg-pool folded into fc1), x dtype
    w2t_ref: (H, C) f32
    e_ref  : (C, C*L) 0/1 expander in bf16, E[c, c*L + l] = 1 (per-channel broadcast on MXU)
    """
    x = x_ref[...]                                                       # (tb, C*L)
    h = jnp.dot(x, a_ref[...], preferred_element_type=jnp.float32)      # (tb, H) pool + fc1
    h = jnp.maximum(h, 0.0)
    z = jnp.dot(h, w2t_ref[...], preferred_element_type=jnp.float32)    # (tb, C)
    s = pl.reciprocal(1.0 + jnp.exp(-z), approx=True)                   # sigmoid (EUP exp + vrcp)
    s_exp = jnp.dot(s.astype(e_ref.dtype), e_ref[...],
                    preferred_element_type=o_ref.dtype)                  # (tb, C*L), out dtype
    o_ref[...] = (x * s_exp).astype(o_ref.dtype)


def _se_kernel_3d(x_ref, w1t_ref, w2t_ref, o_ref):
    """Plain NCL path for L >= 128 (last dim already lane-dense)."""
    x = x_ref[...]                                                       # (tb, C, L)
    y = jnp.sum(x, axis=-1, dtype=jnp.float32)                           # (tb, C); 1/L in w1t
    h = jnp.maximum(jnp.dot(y, w1t_ref[...], preferred_element_type=jnp.float32), 0.0)
    z = jnp.dot(h, w2t_ref[...], preferred_element_type=jnp.float32)
    s = pl.reciprocal(1.0 + jnp.exp(-z), approx=True)
    o_ref[...] = (x * s[:, :, None].astype(x.dtype)).astype(o_ref.dtype)


def _make_excite_kernel(total_l, tl):
    """Two-pass pass A: pooled sum over L tiles + excitation at the last L step."""
    needs_mask = (total_l % tl) != 0

    def kernel(x_ref, w1t_ref, w2t_ref, s_ref, acc_ref):
        li = pl.program_id(1)

        @pl.when(li == 0)
        def _init():
            acc_ref[...] = jnp.zeros_like(acc_ref)

        x = x_ref[...].astype(jnp.float32)                               # (tb, C, tl)
        if needs_mask:  # boundary L block: zero out-of-range lanes so they don't pollute the sum
            pos = li * tl + lax.broadcasted_iota(jnp.int32, x.shape, 2)
            x = jnp.where(pos < total_l, x, 0.0)
        acc_ref[...] += jnp.sum(x, axis=-1)

        @pl.when(li == pl.num_programs(1) - 1)
        def _finalize():
            y = acc_ref[...]                                             # pooled sum; 1/L in w1t
            h = jnp.maximum(jnp.dot(y, w1t_ref[...], preferred_element_type=jnp.float32), 0.0)
            z = jnp.dot(h, w2t_ref[...], preferred_element_type=jnp.float32)
            s_ref[...] = pl.reciprocal(1.0 + jnp.exp(-z), approx=True).astype(s_ref.dtype)

    return kernel


def _se_scale_kernel(x_ref, s_ref, o_ref):
    """Two-pass pass B: pure-streaming per-channel scale."""
    s = s_ref[...]
    o_ref[...] = (x_ref[...] * s[:, :, None]).astype(o_ref.dtype)


# ----------------------------------------------------------------------------------------
# Layer wrapper (weights are prepared once per (L, dtype) and cached)
# ----------------------------------------------------------------------------------------
class SELayerPallas:
    """Pallas TPU SELayer. w1: (C//r, C), w2: (C, C//r) in torch nn.Linear layout (no bias)."""

    def __init__(self, w1, w2, *, _force_path=None, _max_batch_tile=None, _max_seq_tile=None):
        self.w1 = jnp.asarray(w1)
        self.w2 = jnp.asarray(w2)
        self.channel = self.w1.shape[1]
        self._cache = {}
        self._force_path = _force_path          # None | "2d" | "3d" | "two_pass" (testing knob)
        self._max_batch_tile = _max_batch_tile  # testing knob
        self._max_seq_tile = _max_seq_tile      # testing knob

    def _prepared(self, L, dtype, lane_dense):
        key = (int(L), jnp.dtype(dtype).name, bool(lane_dense))
        if key not in self._cache:
            w1t = self.w1.astype(jnp.float32).T * (1.0 / float(L))   # (C, H), avg-pool folded in
            w2t = self.w2.astype(jnp.float32).T                      # (H, C)
            if lane_dense:
                C = self.channel
                a = jnp.repeat(w1t, L, axis=0).astype(dtype)               # (C*L, H)
                e = jnp.repeat(jnp.eye(C, dtype=jnp.bfloat16), L, axis=1)  # (C, C*L) 0/1 expander
                self._cache[key] = (a, w2t, e)
            else:
                self._cache[key] = (w1t, w2t)
        return self._cache[key]

    def __call__(self, x):
        B, C, L = x.shape
        assert C == self.channel, f"expected {self.channel} channels, got {C}"
        dtype = x.dtype
        itemsize = jnp.dtype(dtype).itemsize
        granule = _SUBLANE_GRANULE.get(itemsize, 8)
        budget = _vmem_budget_bytes()
        target_block = min(8 << 20, max(2 << 20, budget // 8))
        row_bytes = C * L * itemsize

        path = self._force_path
        if path is None:
            # Lane-dense expander path only while the O(C^2 L) expander stays small.
            if L < 128 and C * C * L * 2 <= (4 << 20):
                path = "2d"
            else:
                w1t, w2t = self._prepared(L, dtype, False)
                if 5 * min(B, granule) * row_bytes + _resident_bytes(w1t, w2t) <= budget:
                    path = "3d"
                else:
                    path = "two_pass"

        cp_batch = pltpu.CompilerParams(dimension_semantics=("parallel",),
                                        vmem_limit_bytes=budget)

        if path == "2d":
            a, w2t, e = self._prepared(L, dtype, True)
            fixed = _resident_bytes(a, w2t, e)
            tb = _pick_batch_tile(B, row_bytes, 5 * row_bytes, fixed, budget,
                                  target_block, granule, self._max_batch_tile)
            CL = C * L
            x2 = x.reshape(B, CL)  # free row-major reshape: every load/store uses 128 lanes
            out2 = pl.pallas_call(
                _se_kernel_2d,
                out_shape=jax.ShapeDtypeStruct((B, CL), dtype),
                grid_spec=pltpu.PrefetchScalarGridSpec(
                    num_scalar_prefetch=0,
                    grid=(_cdiv(B, tb),),
                    in_specs=[
                        pl.BlockSpec((tb, CL), lambda i: (i, 0)),
                        # Constant index maps: weights DMA'd once, resident across grid steps.
                        pl.BlockSpec(a.shape, lambda i: (0, 0)),
                        pl.BlockSpec(w2t.shape, lambda i: (0, 0)),
                        pl.BlockSpec(e.shape, lambda i: (0, 0)),
                    ],
                    out_specs=pl.BlockSpec((tb, CL), lambda i: (i, 0)),
                ),
                compiler_params=cp_batch,
            )(x2, a, w2t, e)
            return out2.reshape(B, C, L)

        if path == "3d":
            w1t, w2t = self._prepared(L, dtype, False)
            fixed = _resident_bytes(w1t, w2t)
            tb = _pick_batch_tile(B, row_bytes, 5 * row_bytes, fixed, budget,
                                  target_block, granule, self._max_batch_tile)
            return pl.pallas_call(
                _se_kernel_3d,
                out_shape=jax.ShapeDtypeStruct((B, C, L), dtype),
                grid_spec=pltpu.PrefetchScalarGridSpec(
                    num_scalar_prefetch=0,
                    grid=(_cdiv(B, tb),),
                    in_specs=[
                        pl.BlockSpec((tb, C, L), lambda i: (i, 0, 0)),
                        pl.BlockSpec(w1t.shape, lambda i: (0, 0)),
                        pl.BlockSpec(w2t.shape, lambda i: (0, 0)),
                    ],
                    out_specs=pl.BlockSpec((tb, C, L), lambda i: (i, 0, 0)),
                ),
                compiler_params=cp_batch,
            )(x, w1t, w2t)

        # Two-pass fallback: (1) pooled excitation tiled over L, (2) scale-only streaming pass.
        w1t, w2t = self._prepared(L, dtype, False)
        fixed = _resident_bytes(w1t, w2t)
        tb, tl = _pick_two_pass_tiles(B, C, L, itemsize, granule, budget, fixed,
                                      target_block, self._max_seq_tile)
        nb, nl = _cdiv(B, tb), _cdiv(L, tl)
        s = pl.pallas_call(
            _make_excite_kernel(L, tl),
            out_shape=jax.ShapeDtypeStruct((B, C), dtype),
            grid_spec=pltpu.PrefetchScalarGridSpec(
                num_scalar_prefetch=0,
                grid=(nb, nl),
                in_specs=[
                    pl.BlockSpec((tb, C, tl), lambda i, j: (i, 0, j)),
                    pl.BlockSpec(w1t.shape, lambda i, j: (0, 0)),
                    pl.BlockSpec(w2t.shape, lambda i, j: (0, 0)),
                ],
                out_specs=pl.BlockSpec((tb, C), lambda i, j: (i, 0)),
                scratch_shapes=[pltpu.VMEM((tb, C), jnp.float32)],
            ),
            compiler_params=pltpu.CompilerParams(
                dimension_semantics=("parallel", "arbitrary"),
                vmem_limit_bytes=budget),
        )(x, w1t, w2t)
        return pl.pallas_call(
            _se_scale_kernel,
            out_shape=jax.ShapeDtypeStruct((B, C, L), dtype),
            grid_spec=pltpu.PrefetchScalarGridSpec(
                num_scalar_prefetch=0,
                grid=(nb, nl),
                in_specs=[
                    pl.BlockSpec((tb, C, tl), lambda i, j: (i, 0, j)),
                    pl.BlockSpec((tb, C), lambda i, j: (i, 0)),
                ],
                out_specs=pl.BlockSpec((tb, C, tl), lambda i, j: (i, 0, j)),
            ),
            compiler_params=pltpu.CompilerParams(
                dimension_semantics=("parallel", "parallel"),
                vmem_limit_bytes=budget),
        )(x, s)


def se_layer_ref(x, w1, w2):
    y = jnp.mean(x, axis=-1)                      # (B, C)
    h = jnp.maximum(y @ w1.T, 0.0)                # (B, H)
    s = jax.nn.sigmoid(h @ w2.T)                  # (B, C)
    return x * s[:, :, None]


# ----------------------------------------------------------------------------------------
# Self-test
# ----------------------------------------------------------------------------------------
if __name__ == "__main__":
    def _check(key, B, C, L, reduction, dtype=jnp.float32, tol=2e-2,
               force_path=None, max_batch_tile=None, max_seq_tile=None):
        H = max(1, C // reduction)
        kx, k1, k2 = jax.random.split(key, 3)
        x = jax.random.normal(kx, (B, C, L), dtype=jnp.float32).astype(dtype)
        # torch nn.Linear weight layout: (out_features, in_features), bias=False.
        w1 = jax.random.normal(k1, (H, C), dtype=jnp.float32) * 0.1
        w2 = jax.random.normal(k2, (C, H), dtype=jnp.float32) * 0.1

        layer = SELayerPallas(w1, w2, _force_path=force_path,
                              _max_batch_tile=max_batch_tile, _max_seq_tile=max_seq_tile)
        out = jax.block_until_ready(layer(x))
        assert out.shape == (B, C, L), out.shape
        ref = se_layer_ref(x.astype(jnp.float32), w1, w2)
        out32 = out.astype(jnp.float32)
        err = float(jnp.max(jnp.abs(out32 - ref)))
        # Tolerance covers default MXU precision (bf16 passes), the bf16 expander/scale and the
        # approximate reciprocal; observed error is well below these bounds.
        assert jnp.allclose(out32, ref, atol=tol, rtol=tol), (
            f"B={B} C={C} L={L} dtype={jnp.dtype(dtype).name} path={force_path}: max err {err}")

    key = jax.random.PRNGKey(0)
    keys = jax.random.split(key, 5)
    # Lane-dense 2D path (L < 128), tiny batch (single full-batch block).
    _check(keys[0], B=2, C=64, L=16, reduction=16)
    # 2D path with multiple grid steps and a partial boundary batch block (no padding copies).
    _check(keys[1], B=20, C=64, L=16, reduction=16, max_batch_tile=8)
    # Plain 3D path (L >= 128).
    _check(keys[2], B=4, C=64, L=128, reduction=16)
    # bf16 inputs through the 3D path.
    _check(keys[3], B=4, C=64, L=128, reduction=16, dtype=jnp.bfloat16, tol=4e-2)
    # Two-pass fallback forced at a small shape: L tiled (with a ragged 200 % 128 tail mask).
    _check(keys[4], B=4, C=64, L=200, reduction=16, force_path="two_pass", max_seq_tile=128)
    print("KERNEL_OK")
</pallas_src>

<mosaic_0001>
module attributes {stable_mosaic.version = 11 : i64} {
  func.func @_se_kernel_2d(%arg0: i32, %arg1: memref<2x1024xf32, #tpu.memory_space<vmem>>, %arg2: memref<1024x4xf32, #tpu.memory_space<vmem>>, %arg3: memref<4x64xf32, #tpu.memory_space<vmem>>, %arg4: memref<64x1024xbf16, #tpu.memory_space<vmem>>, %arg5: memref<2x1024xf32, #tpu.memory_space<vmem>>) attributes {dimension_semantics = [#tpu.dimension_semantics<parallel>], iteration_bounds = array<i64: 1>, scalar_prefetch = 0 : i64, scratch_operands = 0 : i64, tpu.core_type = #tpu.core_type<tc>, window_params = [{transform_indices = @transform_0, window_bounds = array<i64: 2, 1024>}, {pipeline_mode = #tpu.pipeline_mode<synchronous>, transform_indices = @transform_1, window_bounds = array<i64: 1024, 4>}, {pipeline_mode = #tpu.pipeline_mode<synchronous>, transform_indices = @transform_2, window_bounds = array<i64: 4, 64>}, {pipeline_mode = #tpu.pipeline_mode<synchronous>, transform_indices = @transform_3, window_bounds = array<i64: 64, 1024>}, {transform_indices = @transform_4, window_bounds = array<i64: 2, 1024>}]} {
    %c0 = arith.constant 0 : index
    %c0_0 = arith.constant 0 : index
    %0 = vector.load %arg1[%c0, %c0_0] : memref<2x1024xf32, #tpu.memory_space<vmem>>, vector<2x1024xf32>
    %c0_1 = arith.constant 0 : index
    %c0_2 = arith.constant 0 : index
    %1 = vector.load %arg2[%c0_1, %c0_2] : memref<1024x4xf32, #tpu.memory_space<vmem>>, vector<1024x4xf32>
    %cst = arith.constant dense<0.000000e+00> : vector<2x4xf32>
    %2 = tpu.matmul %0, %1, %cst {dimension_numbers = #tpu.dot_dimension_numbers<[1], [0], [0], [1], [0, 0, 1, 1], [], []>} : vector<2x1024xf32>, vector<1024x4xf32>, vector<2x4xf32> -> vector<2x4xf32>
    %cst_3 = arith.constant 0.000000e+00 : f32
    %3 = vector.broadcast %cst_3 : f32 to vector<2x4xf32>
    %4 = arith.maximumf %2, %3 : vector<2x4xf32>
    %c0_4 = arith.constant 0 : index
    %c0_5 = arith.constant 0 : index
    %5 = vector.load %arg3[%c0_4, %c0_5] : memref<4x64xf32, #tpu.memory_space<vmem>>, vector<4x64xf32>
    %cst_6 = arith.constant dense<0.000000e+00> : vector<2x64xf32>
    %6 = tpu.matmul %4, %5, %cst_6 {dimension_numbers = #tpu.dot_dimension_numbers<[1], [0], [0], [1], [0, 0, 1, 1], [], []>} : vector<2x4xf32>, vector<4x64xf32>, vector<2x64xf32> -> vector<2x64xf32>
    %cst_7 = arith.constant 0.000000e+00 : f32
    %7 = vector.broadcast %cst_7 : f32 to vector<2x64xf32>
    %8 = arith.subf %7, %6 : vector<2x64xf32>
    %9 = math.exp %8 : vector<2x64xf32>
    %cst_8 = arith.constant 1.000000e+00 : f32
    %10 = vector.broadcast %cst_8 : f32 to vector<2x64xf32>
    %11 = arith.addf %10, %9 : vector<2x64xf32>
    %12 = tpu.reciprocal %11 {approx = true} : vector<2x64xf32> -> vector<2x64xf32>
    %13 = arith.truncf %12 : vector<2x64xf32> to vector<2x64xbf16>
    %c0_9 = arith.constant 0 : index
    %c0_10 = arith.constant 0 : index
    %14 = vector.load %arg4[%c0_9, %c0_10] : memref<64x1024xbf16, #tpu.memory_space<vmem>>, vector<64x1024xbf16>
    %cst_11 = arith.constant dense<0.000000e+00> : vector<2x1024xf32>
    %15 = tpu.matmul %13, %14, %cst_11 {dimension_numbers = #tpu.dot_dimension_numbers<[1], [0], [0], [1], [0, 0, 1, 1], [], []>} : vector<2x64xbf16>, vector<64x1024xbf16>, vector<2x1024xf32> -> vector<2x1024xf32>
    %16 = arith.mulf %0, %15 : vector<2x1024xf32>
    %c0_12 = arith.constant 0 : index
    %c0_13 = arith.constant 0 : index
    %17 = vector.load %arg5[%c0_12, %c0_13] : memref<2x1024xf32, #tpu.memory_space<vmem>>, vector<2x1024xf32>
    tpu.vector_store %arg5[%c0_12, %c0_13], %16 {strides = array<i32>} : memref<2x1024xf32, #tpu.memory_space<vmem>>, vector<2x1024xf32>,
    return
  }
  func.func @transform_0(%arg0: i32) -> (i32, i32) {
    %c0_i32 = arith.constant 0 : i32
    %c0_i32_0 = arith.constant 0 : i32
    return %arg0, %c0_i32 : i32, i32
  }
  func.func @transform_1(%arg0: i32) -> (i32, i32) {
    %c0_i32 = arith.constant 0 : i32
    %c0_i32_0 = arith.constant 0 : i32
    %c0_i32_1 = arith.constant 0 : i32
    return %c0_i32, %c0_i32_0 : i32, i32
  }
  func.func @transform_2(%arg0: i32) -> (i32, i32) {
    %c0_i32 = arith.constant 0 : i32
    %c0_i32_0 = arith.constant 0 : i32
    %c0_i32_1 = arith.constant 0 : i32
    return %c0_i32, %c0_i32_0 : i32, i32
  }
  func.func @transform_3(%arg0: i32) -> (i32, i32) {
    %c0_i32 = arith.constant 0 : i32
    %c0_i32_0 = arith.constant 0 : i32
    %c0_i32_1 = arith.constant 0 : i32
    return %c0_i32, %c0_i32_0 : i32, i32
  }
  func.func @transform_4(%arg0: i32) -> (i32, i32) {
    %c0_i32 = arith.constant 0 : i32
    %c0_i32_0 = arith.constant 0 : i32
    return %arg0, %c0_i32 : i32, i32
  }
}

</mosaic_0001>

<llo_original>
// kernel: tpu_custom_call.1
$region0: #{tpu_custom_call.1}
  #allocation0 [shape = 'u32[]', space=smem, size = 0x4, offset = 0x4, fixed_abs, tag = 'smem constant byte address 0x4 - core index']
  #allocation1 [shape = 'u32[72,128]{1,0:T(1,128)}', space=vmem, size = 0x9000, scoped, tag = 'internal scratch']
  %s0 = inlined_call_operand.vmem [shape: f32[2,1024], index: 0, kind: input, shape index: {}]
  %s1 = inlined_call_operand.vmem [shape: f32[1024,4], index: 1, kind: input, shape index: {}]
  %s2 = inlined_call_operand.vmem [shape: f32[4,64], index: 2, kind: input, shape index: {}]
  %s3 = inlined_call_operand.vmem [shape: bf16[64,1024], index: 3, kind: input, shape index: {}]
  %s4 = inlined_call_operand.hbm [shape: f32[2,1024], index: 4, kind: output, shape index: {}]
  %s5 = sld [smem:[#allocation0]]
  $region26: #{tpu_custom_call.1} parent=0
    _
  %s7 = ssub.s32 1, %s5
  %s8 = scalar_select 0, %s7, %s5
  $region1: #{tpu_custom_call.1} parent=0
    #allocation2 [shape = 'u8[8192]{0}', space=vmem, size = 0x2000, scoped, tag = 'output window, operand 0, single buffered']
    #allocation3 [shape = 's32[1]{0}', space=sflag, size = 0x4, scoped, tag = 'scoped memory for tpu_custom_call.1']
    %9 = vsyncpa [#allocation3], 0
    // Predicated region
    $region2: #{tpu_custom_call.1} parent=1 // pred_check
      _
    $region3: #{tpu_custom_call.1} parent=1 // pred_check_branch
      %11 = sbr.rel (0) target = $region5
    $region4: #{tpu_custom_call.1} parent=1 // pred_region
      _
    $region5: #{tpu_custom_call.1} parent=1 // pred_fallthru
      _
    // Predicated region
    $region6: #{tpu_custom_call.1} parent=1 // pred_check
      _
    $region7: #{tpu_custom_call.1} parent=1 // pred_check_branch
      %13 = sbr.rel (0) target = $region9
    $region8: #{tpu_custom_call.1} parent=1 // pred_region
      _
    $region9: #{tpu_custom_call.1} parent=1 // pred_fallthru
      _
    // Predicated region
    $region10: #{tpu_custom_call.1} parent=1 // pred_check
      _
    $region11: #{tpu_custom_call.1} parent=1 // pred_check_branch
      %15 = sbr.rel (0) target = $region13
    $region12: #{tpu_custom_call.1} parent=1 // pred_region
      _
    $region13: #{tpu_custom_call.1} parent=1 // pred_fallthru
      _
    // Predicated region
    $region14: #{tpu_custom_call.1} parent=1 // pred_check
      _
    $region15: #{tpu_custom_call.1} parent=1 // pred_check_branch
      %17 = sbr.rel (0) target = $region17
    $region16: #{tpu_custom_call.1} parent=1 // pred_region
      _
    $region17: #{tpu_custom_call.1} parent=1 // pred_fallthru
      _
    %v19 = vld [vmem:[%s0] sm:$0xff]
    %v20 = vld [vmem:[%s0 + $0x8] sm:$0xff]
    %v21 = vld [vmem:[%s1] sm:$0xff]
    %v22 = vld [vmem:[%s1 + $0x8] sm:$0xff]
    %v23 = vld [vmem:[%s1 + $0x10] sm:$0xff]
    %v24 = vld [vmem:[%s1 + $0x18] sm:$0xff]
    %v25 = vld [vmem:[%s1 + $0x20] sm:$0xff]
    %v26 = vld [vmem:[%s1 + $0x28] sm:$0xff]
    %v27 = vld [vmem:[%s1 + $0x30] sm:$0xff]
    %v28 = vld [vmem:[%s1 + $0x38] sm:$0xff]
    %v29 = vld [vmem:[%s1 + $0x40] sm:$0xff]
    %v30 = vld [vmem:[%s1 + $0x48] sm:$0xff]
    %v31 = vld [vmem:[%s1 + $0x50] sm:$0xff]
    %v32 = vld [vmem:[%s1 + $0x58] sm:$0xff]
    %v33 = vld [vmem:[%s1 + $0x60] sm:$0xff]
    %v34 = vld [vmem:[%s1 + $0x68] sm:$0xff]
    %v35 = vld [vmem:[%s1 + $0x70] sm:$0xff]
    %v36 = vld [vmem:[%s1 + $0x78] sm:$0xff]
    %v37 = vld [vmem:[%s1 + $0x80] sm:$0xff]
    %v38 = vld [vmem:[%s1 + $0x88] sm:$0xff]
    %v39 = vld [vmem:[%s1 + $0x90] sm:$0xff]
    %v40 = vld [vmem:[%s1 + $0x98] sm:$0xff]
    %v41 = vld [vmem:[%s1 + $0xa0] sm:$0xff]
    %v42 = vld [vmem:[%s1 + $0xa8] sm:$0xff]
    %v43 = vld [vmem:[%s1 + $0xb0] sm:$0xff]
    %v44 = vld [vmem:[%s1 + $0xb8] sm:$0xff]
    %v45 = vld [vmem:[%s1 + $0xc0] sm:$0xff]
    %v46 = vld [vmem:[%s1 + $0xc8] sm:$0xff]
    %v47 = vld [vmem:[%s1 + $0xd0] sm:$0xff]
    %v48 = vld [vmem:[%s1 + $0xd8] sm:$0xff]
    %v49 = vld [vmem:[%s1 + $0xe0] sm:$0xff]
    %v50 = vld [vmem:[%s1 + $0xe8] sm:$0xff]
    %v51 = vld [vmem:[%s1 + $0xf0] sm:$0xff]
    %v52 = vld [vmem:[%s1 + $0xf8] sm:$0xff]
    %v53 = vld [vmem:[%s1 + $0x100] sm:$0xff]
    %v54 = vld [vmem:[%s1 + $0x108] sm:$0xff]
    %v55 = vld [vmem:[%s1 + $0x110] sm:$0xff]
    %v56 = vld [vmem:[%s1 + $0x118] sm:$0xff]
    %v57 = vld [vmem:[%s1 + $0x120] sm:$0xff]
    %v58 = vld [vmem:[%s1 + $0x128] sm:$0xff]
    %v59 = vld [vmem:[%s1 + $0x130] sm:$0xff]
    %v60 = vld [vmem:[%s1 + $0x138] sm:$0xff]
    %v61 = vld [vmem:[%s1 + $0x140] sm:$0xff]
    %v62 = vld [vmem:[%s1 + $0x148] sm:$0xff]
    %v63 = vld [vmem:[%s1 + $0x150] sm:$0xff]
    %v64 = vld [vmem:[%s1 + $0x158] sm:$0xff]
    %v65 = vld [vmem:[%s1 + $0x160] sm:$0xff]
    %v66 = vld [vmem:[%s1 + $0x168] sm:$0xff]
    %v67 = vld [vmem:[%s1 + $0x170] sm:$0xff]
    %v68 = vld [vmem:[%s1 + $0x178] sm:$0xff]
    %v69 = vld [vmem:[%s1 + $0x180] sm:$0xff]
    %v70 = vld [vmem:[%s1 + $0x188] sm:$0xff]
    %v71 = vld [vmem:[%s1 + $0x190] sm:$0xff]
    %v72 = vld [vmem:[%s1 + $0x198] sm:$0xff]
    %v73 = vld [vmem:[%s1 + $0x1a0] sm:$0xff]
    %v74 = vld [vmem:[%s1 + $0x1a8] sm:$0xff]
    %v75 = vld [vmem:[%s1 + $0x1b0] sm:$0xff]
    %v76 = vld [vmem:[%s1 + $0x1b8] sm:$0xff]
    %v77 = vld [vmem:[%s1 + $0x1c0] sm:$0xff]
    %v78 = vld [vmem:[%s1 + $0x1c8] sm:$0xff]
    %v79 = vld [vmem:[%s1 + $0x1d0] sm:$0xff]
    %v80 = vld [vmem:[%s1 + $0x1d8] sm:$0xff]
    %v81 = vld [vmem:[%s1 + $0x1e0] sm:$0xff]
    %v82 = vld [vmem:[%s1 + $0x1e8] sm:$0xff]
    %v83 = vld [vmem:[%s1 + $0x1f0] sm:$0xff]
    %v84 = vld [vmem:[%s1 + $0x1f8] sm:$0xff]
    %v85 = vld [vmem:[%s1 + $0x200] sm:$0xff]
    %v86 = vld [vmem:[%s1 + $0x208] sm:$0xff]
    %v87 = vld [vmem:[%s1 + $0x210] sm:$0xff]
    %v88 = vld [vmem:[%s1 + $0x218] sm:$0xff]
    %v89 = vld [vmem:[%s1 + $0x220] sm:$0xff]
    %v90 = vld [vmem:[%s1 + $0x228] sm:$0xff]
    %v91 = vld [vmem:[%s1 + $0x230] sm:$0xff]
    %v92 = vld [vmem:[%s1 + $0x238] sm:$0xff]
    %v93 = vld [vmem:[%s1 + $0x240] sm:$0xff]
    %v94 = vld [vmem:[%s1 + $0x248] sm:$0xff]
    %v95 = vld [vmem:[%s1 + $0x250] sm:$0xff]
    %v96 = vld [vmem:[%s1 + $0x258] sm:$0xff]
    %v97 = vld [vmem:[%s1 + $0x260] sm:$0xff]
    %v98 = vld [vmem:[%s1 + $0x268] sm:$0xff]
    %v99 = vld [vmem:[%s1 + $0x270] sm:$0xff]
    %v100 = vld [vmem:[%s1 + $0x278] sm:$0xff]
    %v101 = vld [vmem:[%s1 + $0x280] sm:$0xff]
    %v102 = vld [vmem:[%s1 + $0x288] sm:$0xff]
    %v103 = vld [vmem:[%s1 + $0x290] sm:$0xff]
    %v104 = vld [vmem:[%s1 + $0x298] sm:$0xff]
    %v105 = vld [vmem:[%s1 + $0x2a0] sm:$0xff]
    %v106 = vld [vmem:[%s1 + $0x2a8] sm:$0xff]
    %v107 = vld [vmem:[%s1 + $0x2b0] sm:$0xff]
    %v108 = vld [vmem:[%s1 + $0x2b8] sm:$0xff]
    %v109 = vld [vmem:[%s1 + $0x2c0] sm:$0xff]
    %v110 = vld [vmem:[%s1 + $0x2c8] sm:$0xff]
    %v111 = vld [vmem:[%s1 + $0x2d0] sm:$0xff]
    %v112 = vld [vmem:[%s1 + $0x2d8] sm:$0xff]
    %v113 = vld [vmem:[%s1 + $0x2e0] sm:$0xff]
    %v114 = vld [vmem:[%s1 + $0x2e8] sm:$0xff]
    %v115 = vld [vmem:[%s1 + $0x2f0] sm:$0xff]
    %v116 = vld [vmem:[%s1 + $0x2f8] sm:$0xff]
    %v117 = vld [vmem:[%s1 + $0x300] sm:$0xff]
    %v118 = vld [vmem:[%s1 + $0x308] sm:$0xff]
    %v119 = vld [vmem:[%s1 + $0x310] sm:$0xff]
    %v120 = vld [vmem:[%s1 + $0x318] sm:$0xff]
    %v121 = vld [vmem:[%s1 + $0x320] sm:$0xff]
    %v122 = vld [vmem:[%s1 + $0x328] sm:$0xff]
    %v123 = vld [vmem:[%s1 + $0x330] sm:$0xff]
    %v124 = vld [vmem:[%s1 + $0x338] sm:$0xff]
    %v125 = vld [vmem:[%s1 + $0x340] sm:$0xff]
    %v126 = vld [vmem:[%s1 + $0x348] sm:$0xff]
    %v127 = vld [vmem:[%s1 + $0x350] sm:$0xff]
    %v128 = vld [vmem:[%s1 + $0x358] sm:$0xff]
    %v129 = vld [vmem:[%s1 + $0x360] sm:$0xff]
    %v130 = vld [vmem:[%s1 + $0x368] sm:$0xff]
    %v131 = vld [vmem:[%s1 + $0x370] sm:$0xff]
    %v132 = vld [vmem:[%s1 + $0x378] sm:$0xff]
    %v133 = vld [vmem:[%s1 + $0x380] sm:$0xff]
    %v134 = vld [vmem:[%s1 + $0x388] sm:$0xff]
    %v135 = vld [vmem:[%s1 + $0x390] sm:$0xff]
    %v136 = vld [vmem:[%s1 + $0x398] sm:$0xff]
    %v137 = vld [vmem:[%s1 + $0x3a0] sm:$0xff]
    %v138 = vld [vmem:[%s1 + $0x3a8] sm:$0xff]
    %v139 = vld [vmem:[%s1 + $0x3b0] sm:$0xff]
    %v140 = vld [vmem:[%s1 + $0x3b8] sm:$0xff]
    %v141 = vld [vmem:[%s1 + $0x3c0] sm:$0xff]
    %v142 = vld [vmem:[%s1 + $0x3c8] sm:$0xff]
    %v143 = vld [vmem:[%s1 + $0x3d0] sm:$0xff]
    %v144 = vld [vmem:[%s1 + $0x3d8] sm:$0xff]
    %v145 = vld [vmem:[%s1 + $0x3e0] sm:$0xff]
    %v146 = vld [vmem:[%s1 + $0x3e8] sm:$0xff]
    %v147 = vld [vmem:[%s1 + $0x3f0] sm:$0xff]
    %v148 = vld [vmem:[%s1 + $0x3f8] sm:$0xff]
    %151 = vst [vmem:[#allocation1] ss:$4 sm:$0xff] %v19
    %s152 = scalar_lea.vmem [#allocation1], 32
    %153 = vst [vmem:[%s152] ss:$4 sm:$0xff] %v20
    %v154 = vld.sshfl [vmem:[#allocation1] sm:$0xff pattern:$0x73625140]
    %v155 = vld.sshfl [vmem:[#allocation1 + $0x8] sm:$0xff pattern:$0x73625140]
    %v156 = vld.sshfl [vmem:[#allocation1 + $0x10] sm:$0xff pattern:$0x73625140]
    %v157 = vld.sshfl [vmem:[#allocation1 + $0x18] sm:$0xff pattern:$0x73625140]
    %v158 = vld.sshfl [vmem:[#allocation1 + $0x20] sm:$0xff pattern:$0x73625140]
    %v159 = vld.sshfl [vmem:[#allocation1 + $0x28] sm:$0xff pattern:$0x73625140]
    %v160 = vld.sshfl [vmem:[#allocation1 + $0x30] sm:$0xff pattern:$0x73625140]
    %v161 = vld.sshfl [vmem:[#allocation1 + $0x38] sm:$0xff pattern:$0x73625140]
    %170 = vmatpush.msra.mxu0 %v36
    %171 = vmatpush.msra.mxu0 %v35
    %172 = vmatpush.msra.mxu0 %v34
    %173 = vmatpush.msra.mxu0 %v33
    %174 = vmatpush.msra.mxu0 %v32
    %175 = vmatpush.msra.mxu0 %v31
    %176 = vmatpush.msra.mxu0 %v30
    %177 = vmatpush.msra.mxu0 %v29
    %178 = vmatpush.msra.mxu0 %v28
    %179 = vmatpush.msra.mxu0 %v27
    %180 = vmatpush.msra.mxu0 %v26
    %181 = vmatpush.msra.mxu0 %v25
    %182 = vmatpush.msra.mxu0 %v24
    %183 = vmatpush.msra.mxu0 %v23
    %184 = vmatpush.msra.mxu0 %v22
    %185 = vmatpush.msra.mxu0 %v21
    %186 = vmatmul.f32.gmra.mxu0 %v154
    %v187 = vpop.f32.mrf.mxu0
    %v188 = vadd.f32 0.0, %v187
    %189 = vdwg.mxu0
    %190 = vmatpush.msra.mxu0 %v52
    %191 = vmatpush.msra.mxu0 %v51
    %192 = vmatpush.msra.mxu0 %v50
    %193 = vmatpush.msra.mxu0 %v49
    %194 = vmatpush.msra.mxu0 %v48
    %195 = vmatpush.msra.mxu0 %v47
    %196 = vmatpush.msra.mxu0 %v46
    %197 = vmatpush.msra.mxu0 %v45
    %198 = vmatpush.msra.mxu0 %v44
    %199 = vmatpush.msra.mxu0 %v43
    %200 = vmatpush.msra.mxu0 %v42
    %201 = vmatpush.msra.mxu0 %v41
    %202 = vmatpush.msra.mxu0 %v40
    %203 = vmatpush.msra.mxu0 %v39
    %204 = vmatpush.msra.mxu0 %v38
    %205 = vmatpush.msra.mxu0 %v37
    %206 = vmatmul.f32.gmra.mxu0 %v155
    %v207 = vpop.f32.mrf.mxu0
    %v208 = vadd.f32 %v188, %v207
    %209 = vdwg.mxu0
    %210 = vmatpush.msra.mxu0 %v68
    %211 = vmatpush.msra.mxu0 %v67
    %212 = vmatpush.msra.mxu0 %v66
    %213 = vmatpush.msra.mxu0 %v65
    %214 = vmatpush.msra.mxu0 %v64
    %215 = vmatpush.msra.mxu0 %v63
    %216 = vmatpush.msra.mxu0 %v62
    %217 = vmatpush.msra.mxu0 %v61
    %218 = vmatpush.msra.mxu0 %v60
    %219 = vmatpush.msra.mxu0 %v59
    %220 = vmatpush.msra.mxu0 %v58
    %221 = vmatpush.msra.mxu0 %v57
    %222 = vmatpush.msra.mxu0 %v56
    %223 = vmatpush.msra.mxu0 %v55
    %224 = vmatpush.msra.mxu0 %v54
    %225 = vmatpush.msra.mxu0 %v53
    %226 = vmatmul.f32.gmra.mxu0 %v156
    %v227 = vpop.f32.mrf.mxu0
    %v228 = vadd.f32 %v208, %v227
    %229 = vdwg.mxu0
    %230 = vmatpush.msra.mxu0 %v84
    %231 = vmatpush.msra.mxu0 %v83
    %232 = vmatpush.msra.mxu0 %v82
    %233 = vmatpush.msra.mxu0 %v81
    %234 = vmatpush.msra.mxu0 %v80
    %235 = vmatpush.msra.mxu0 %v79
    %236 = vmatpush.msra.mxu0 %v78
    %237 = vmatpush.msra.mxu0 %v77
    %238 = vmatpush.msra.mxu0 %v76
    %239 = vmatpush.msra.mxu0 %v75
    %240 = vmatpush.msra.mxu0 %v74
    %241 = vmatpush.msra.mxu0 %v73
    %242 = vmatpush.msra.mxu0 %v72
    %243 = vmatpush.msra.mxu0 %v71
    %244 = vmatpush.msra.mxu0 %v70
    %245 = vmatpush.msra.mxu0 %v69
    %246 = vmatmul.f32.gmra.mxu0 %v157
    %v247 = vpop.f32.mrf.mxu0
    %v248 = vadd.f32 %v228, %v247
    %249 = vdwg.mxu0
    %250 = vmatpush.msra.mxu0 %v100
    %251 = vmatpush.msra.mxu0 %v99
    %252 = vmatpush.msra.mxu0 %v98
    %253 = vmatpush.msra.mxu0 %v97
    %254 = vmatpush.msra.mxu0 %v96
    %255 = vmatpush.msra.mxu0 %v95
    %256 = vmatpush.msra.mxu0 %v94
    %257 = vmatpush.msra.mxu0 %v93
    %258 = vmatpush.msra.mxu0 %v92
    %259 = vmatpush.msra.mxu0 %v91
    %260 = vmatpush.msra.mxu0 %v90
    %261 = vmatpush.msra.mxu0 %v89
    %262 = vmatpush.msra.mxu0 %v88
    %263 = vmatpush.msra.mxu0 %v87
    %264 = vmatpush.msra.mxu0 %v86
    %265 = vmatpush.msra.mxu0 %v85
    %266 = vmatmul.f32.gmra.mxu0 %v158
    %v267 = vpop.f32.mrf.mxu0
    %v268 = vadd.f32 %v248, %v267
    %269 = vdwg.mxu0
    %270 = vmatpush.msra.mxu0 %v116
    %271 = vmatpush.msra.mxu0 %v115
    %272 = vmatpush.msra.mxu0 %v114
    %273 = vmatpush.msra.mxu0 %v113
    %274 = vmatpush.msra.mxu0 %v112
    %275 = vmatpush.msra.mxu0 %v111
    %276 = vmatpush.msra.mxu0 %v110
    %277 = vmatpush.msra.mxu0 %v109
    %278 = vmatpush.msra.mxu0 %v108
    %279 = vmatpush.msra.mxu0 %v107
    %280 = vmatpush.msra.mxu0 %v106
    %281 = vmatpush.msra.mxu0 %v105
    %282 = vmatpush.msra.mxu0 %v104
    %283 = vmatpush.msra.mxu0 %v103
    %284 = vmatpush.msra.mxu0 %v102
    %285 = vmatpush.msra.mxu0 %v101
    %286 = vmatmul.f32.gmra.mxu0 %v159
    %v287 = vpop.f32.mrf.mxu0
    %v288 = vadd.f32 %v268, %v287
    %289 = vdwg.mxu0
    %290 = vmatpush.msra.mxu0 %v132
    %291 = vmatpush.msra.mxu0 %v131
    %292 = vmatpush.msra.mxu0 %v130
    %293 = vmatpush.msra.mxu0 %v129
    %294 = vmatpush.msra.mxu0 %v128
    %295 = vmatpush.msra.mxu0 %v127
    %296 = vmatpush.msra.mxu0 %v126
    %297 = vmatpush.msra.mxu0 %v125
    %298 = vmatpush.msra.mxu0 %v124
    %299 = vmatpush.msra.mxu0 %v123
    %300 = vmatpush.msra.mxu0 %v122
    %301 = vmatpush.msra.mxu0 %v121
    %302 = vmatpush.msra.mxu0 %v120
    %303 = vmatpush.msra.mxu0 %v119
    %304 = vmatpush.msra.mxu0 %v118
    %305 = vmatpush.msra.mxu0 %v117
    %306 = vmatmul.f32.gmra.mxu0 %v160
    %v307 = vpop.f32.mrf.mxu0
    %v308 = vadd.f32 %v288, %v307
    %309 = vdwg.mxu0
    %310 = vmatpush.msra.mxu0 %v148
    %311 = vmatpush.msra.mxu0 %v147
    %312 = vmatpush.msra.mxu0 %v146
    %313 = vmatpush.msra.mxu0 %v145
    %314 = vmatpush.msra.mxu0 %v144
    %315 = vmatpush.msra.mxu0 %v143
    %316 = vmatpush.msra.mxu0 %v142
    %317 = vmatpush.msra.mxu0 %v141
    %318 = vmatpush.msra.mxu0 %v140
    %319 = vmatpush.msra.mxu0 %v139
    %320 = vmatpush.msra.mxu0 %v138
    %321 = vmatpush.msra.mxu0 %v137
    %322 = vmatpush.msra.mxu0 %v136
    %323 = vmatpush.msra.mxu0 %v135
    %324 = vmatpush.msra.mxu0 %v134
    %325 = vmatpush.msra.mxu0 %v133
    %326 = vmatmul.f32.gmra.mxu0 %v161
    %v327 = vpop.f32.mrf.mxu0
    %v328 = vadd.f32 %v308, %v327
    %329 = vdwg.mxu0
    %v330 = vmax.f32 %v328, 0.0
    %v331 = vld [vmem:[%s2] sm:$0xf]
    %vm332 = vcmask 31744
    %v334 = vsel %vm332, %v330, 0
    %vm336 = vcmask 1043456
    %v338 = vsel %vm336, %v331, 0
    %340 = vmatpush.msra.mxu0 0.0
    %341 = vmatpush.msra.mxu0 0.0
    %342 = vmatpush.msra.mxu0 0.0
    %343 = vmatpush.msra.mxu0 0.0
    %344 = vmatpush.msra.mxu0 0.0
    %345 = vmatpush.msra.mxu0 0.0
    %346 = vmatpush.msra.mxu0 0.0
    %347 = vmatpush.msra.mxu0 0.0
    %348 = vmatpush.msra.mxu0 0.0
    %349 = vmatpush.msra.mxu0 0.0
    %350 = vmatpush.msra.mxu0 0.0
    %351 = vmatpush.msra.mxu0 0.0
    %352 = vmatpush.msra.mxu0 0.0
    %353 = vmatpush.msra.mxu0 0.0
    %354 = vmatpush.msra.mxu0 0.0
    %355 = vmatpush.msra.mxu0 %v338
    %356 = vmatmul.f32.gmra.mxu0 %v334
    %v357 = vpop.f32.mrf.mxu0
    %v358 = vadd.f32 0.0, %v357
    %359 = vdwg.mxu0
    %v360 = vsub.f32 0.0, %v358
    %v361 = vmul.f32 %v360, 1.442695
    %v362 = vpow.pop %v361
    %v363 = vadd.f32 %v362, 1.0
    %v364 = vrcp.pop %v363
    %v365 = vpack.c.bf16 %v364, %v364
    %v366 = vld [vmem:[%s3] sm:$0xff]
    %v367 = vld [vmem:[%s3 + $0x8] sm:$0xff]
    %v368 = vld [vmem:[%s3 + $0x10] sm:$0xff]
    %v369 = vld [vmem:[%s3 + $0x18] sm:$0xff]
    %v370 = vld [vmem:[%s3 + $0x20] sm:$0xff]
    %v371 = vld [vmem:[%s3 + $0x28] sm:$0xff]
    %v372 = vld [vmem:[%s3 + $0x30] sm:$0xff]
    %v373 = vld [vmem:[%s3 + $0x38] sm:$0xff]
    %v374 = vld [vmem:[%s3 + $0x40] sm:$0xff]
    %v375 = vld [vmem:[%s3 + $0x48] sm:$0xff]
    %v376 = vld [vmem:[%s3 + $0x50] sm:$0xff]
    %v377 = vld [vmem:[%s3 + $0x58] sm:$0xff]
    %v378 = vld [vmem:[%s3 + $0x60] sm:$0xff]
    %v379 = vld [vmem:[%s3 + $0x68] sm:$0xff]
    %v380 = vld [vmem:[%s3 + $0x70] sm:$0xff]
    %v381 = vld [vmem:[%s3 + $0x78] sm:$0xff]
    %v382 = vld [vmem:[%s3 + $0x80] sm:$0xff]
    %v383 = vld [vmem:[%s3 + $0x88] sm:$0xff]
    %v384 = vld [vmem:[%s3 + $0x90] sm:$0xff]
    %v385 = vld [vmem:[%s3 + $0x98] sm:$0xff]
    %v386 = vld [vmem:[%s3 + $0xa0] sm:$0xff]
    %v387 = vld [vmem:[%s3 + $0xa8] sm:$0xff]
    %v388 = vld [vmem:[%s3 + $0xb0] sm:$0xff]
    %v389 = vld [vmem:[%s3 + $0xb8] sm:$0xff]
    %v390 = vld [vmem:[%s3 + $0xc0] sm:$0xff]
    %v391 = vld [vmem:[%s3 + $0xc8] sm:$0xff]
    %v392 = vld [vmem:[%s3 + $0xd0] sm:$0xff]
    %v393 = vld [vmem:[%s3 + $0xd8] sm:$0xff]
    %v394 = vld [vmem:[%s3 + $0xe0] sm:$0xff]
    %v395 = vld [vmem:[%s3 + $0xe8] sm:$0xff]
    %v396 = vld [vmem:[%s3 + $0xf0] sm:$0xff]
    %v397 = vld [vmem:[%s3 + $0xf8] sm:$0xff]
    %v430 = vunpack.c.l.b16 %v366
    %v431 = vunpack.c.h.b16 %v366
    %v432 = vunpack.c.l.b16 %v367
    %v433 = vunpack.c.h.b16 %v367
    %v434 = vunpack.c.l.b16 %v368
    %v435 = vunpack.c.h.b16 %v368
    %v436 = vunpack.c.l.b16 %v369
    %v437 = vunpack.c.h.b16 %v369
    %v438 = vunpack.c.l.b16 %v370
    %v439 = vunpack.c.h.b16 %v370
    %v440 = vunpack.c.l.b16 %v371
    %v441 = vunpack.c.h.b16 %v371
    %v442 = vunpack.c.l.b16 %v372
    %v443 = vunpack.c.h.b16 %v372
    %v444 = vunpack.c.l.b16 %v373
    %v445 = vunpack.c.h.b16 %v373
    %v446 = vunpack.c.l.b16 %v374
    %v447 = vunpack.c.h.b16 %v374
    %v448 = vunpack.c.l.b16 %v375
    %v449 = vunpack.c.h.b16 %v375
    %v450 = vunpack.c.l.b16 %v376
    %v451 = vunpack.c.h.b16 %v376
    %v452 = vunpack.c.l.b16 %v377
    %v453 = vunpack.c.h.b16 %v377
    %v454 = vunpack.c.l.b16 %v378
    %v455 = vunpack.c.h.b16 %v378
    %v456 = vunpack.c.l.b16 %v379
    %v457 = vunpack.c.h.b16 %v379
    %v458 = vunpack.c.l.b16 %v380
    %v459 = vunpack.c.h.b16 %v380
    %v460 = vunpack.c.l.b16 %v381
    %v461 = vunpack.c.h.b16 %v381
    %v462 = vunpack.c.l.b16 %v382
    %v463 = vunpack.c.h.b16 %v382
    %v464 = vunpack.c.l.b16 %v383
    %v465 = vunpack.c.h.b16 %v383
    %v466 = vunpack.c.l.b16 %v384
    %v467 = vunpack.c.h.b16 %v384
    %v468 = vunpack.c.l.b16 %v385
    %v469 = vunpack.c.h.b16 %v385
    %v470 = vunpack.c.l.b16 %v386
    %v471 = vunpack.c.h.b16 %v386
    %v472 = vunpack.c.l.b16 %v387
    %v473 = vunpack.c.h.b16 %v387
    %v474 = vunpack.c.l.b16 %v388
    %v475 = vunpack.c.h.b16 %v388
    %v476 = vunpack.c.l.b16 %v389
    %v477 = vunpack.c.h.b16 %v389
    %v478 = vunpack.c.l.b16 %v390
    %v479 = vunpack.c.h.b16 %v390
    %v480 = vunpack.c.l.b16 %v391
    %v481 = vunpack.c.h.b16 %v391
    %v482 = vunpack.c.l.b16 %v392
    %v483 = vunpack.c.h.b16 %v392
    %v484 = vunpack.c.l.b16 %v393
    %v485 = vunpack.c.h.b16 %v393
    %v486 = vunpack.c.l.b16 %v394
    %v487 = vunpack.c.h.b16 %v394
    %v488 = vunpack.c.l.b16 %v395
    %v489 = vunpack.c.h.b16 %v395
    %v490 = vunpack.c.l.b16 %v396
    %v491 = vunpack.c.h.b16 %v396
    %v492 = vunpack.c.l.b16 %v397
    %v493 = vunpack.c.h.b16 %v397
    %v494 = vpack.c.b16 %v438, %v430
    %v495 = vpack.c.b16 %v439, %v431
    %v496 = vpack.c.b16 %v440, %v432
    %v497 = vpack.c.b16 %v441, %v433
    %v498 = vpack.c.b16 %v442, %v434
    %v499 = vpack.c.b16 %v443, %v435
    %v500 = vpack.c.b16 %v444, %v436
    %v501 = vpack.c.b16 %v445, %v437
    %v502 = vpack.c.b16 %v454, %v446
    %v503 = vpack.c.b16 %v455, %v447
    %v504 = vpack.c.b16 %v456, %v448
    %v505 = vpack.c.b16 %v457, %v449
    %v506 = vpack.c.b16 %v458, %v450
    %v507 = vpack.c.b16 %v459, %v451
    %v508 = vpack.c.b16 %v460, %v452
    %v509 = vpack.c.b16 %v461, %v453
    %v510 = vpack.c.b16 %v470, %v462
    %v511 = vpack.c.b16 %v471, %v463
    %v512 = vpack.c.b16 %v472, %v464
    %v513 = vpack.c.b16 %v473, %v465
    %v514 = vpack.c.b16 %v474, %v466
    %v515 = vpack.c.b16 %v475, %v467
    %v516 = vpack.c.b16 %v476, %v468
    %v517 = vpack.c.b16 %v477, %v469
    %v518 = vpack.c.b16 %v486, %v478
    %v519 = vpack.c.b16 %v487, %v479
    %v520 = vpack.c.b16 %v488, %v480
    %v521 = vpack.c.b16 %v489, %v481
    %v522 = vpack.c.b16 %v490, %v482
    %v523 = vpack.c.b16 %v491, %v483
    %v524 = vpack.c.b16 %v492, %v484
    %v525 = vpack.c.b16 %v493, %v485
    %vm558 = vcmask 523264
    %v560 = vsel %vm558, %v365, 0
    %562 = vmatpush.bf16.msra.mxu0 0
    %563 = vmatpush.bf16.msra.mxu0 0
    %564 = vmatpush.bf16.msra.mxu0 0
    %565 = vmatpush.bf16.msra.mxu0 0
    %566 = vmatpush.bf16.msra.mxu0 %v518
    %567 = vmatpush.bf16.msra.mxu0 %v510
    %568 = vmatpush.bf16.msra.mxu0 %v502
    %569 = vmatpush.bf16.msra.mxu0 %v494
    %570 = vmatmul.bf16.gmra.mxu0 %v560
    %v571 = vpop.f32.mrf.mxu0
    %v572 = vadd.f32 0.0, %v571
    %v573 = vpop.f32.mrf.mxu0
    %574 = vdwg.mxu0
    %575 = vmatpush.bf16.msra.mxu0 0
    %576 = vmatpush.bf16.msra.mxu0 0
    %577 = vmatpush.bf16.msra.mxu0 0
    %578 = vmatpush.bf16.msra.mxu0 0
    %579 = vmatpush.bf16.msra.mxu0 %v519
    %580 = vmatpush.bf16.msra.mxu0 %v511
    %581 = vmatpush.bf16.msra.mxu0 %v503
    %582 = vmatpush.bf16.msra.mxu0 %v495
    %583 = vmatmul.bf16.gmra.mxu0 %v560
    %v584 = vpop.f32.mrf.mxu0
    %v585 = vadd.f32 0.0, %v584
    %v586 = vpop.f32.mrf.mxu0
    %587 = vdwg.mxu0
    %588 = vmatpush.bf16.msra.mxu0 0
    %589 = vmatpush.bf16.msra.mxu0 0
    %590 = vmatpush.bf16.msra.mxu0 0
    %591 = vmatpush.bf16.msra.mxu0 0
    %592 = vmatpush.bf16.msra.mxu0 %v520
    %593 = vmatpush.bf16.msra.mxu0 %v512
    %594 = vmatpush.bf16.msra.mxu0 %v504
    %595 = vmatpush.bf16.msra.mxu0 %v496
    %596 = vmatmul.bf16.gmra.mxu0 %v560
    %v597 = vpop.f32.mrf.mxu0
    %v598 = vadd.f32 0.0, %v597
    %v599 = vpop.f32.mrf.mxu0
    %600 = vdwg.mxu0
    %601 = vmatpush.bf16.msra.mxu0 0
    %602 = vmatpush.bf16.msra.mxu0 0
    %603 = vmatpush.bf16.msra.mxu0 0
    %604 = vmatpush.bf16.msra.mxu0 0
    %605 = vmatpush.bf16.msra.mxu0 %v521
    %606 = vmatpush.bf16.msra.mxu0 %v513
    %607 = vmatpush.bf16.msra.mxu0 %v505
    %608 = vmatpush.bf16.msra.mxu0 %v497
    %609 = vmatmul.bf16.gmra.mxu0 %v560
    %v610 = vpop.f32.mrf.mxu0
    %v611 = vadd.f32 0.0, %v610
    %v612 = vpop.f32.mrf.mxu0
    %613 = vdwg.mxu0
    %614 = vmatpush.bf16.msra.mxu0 0
    %615 = vmatpush.bf16.msra.mxu0 0
    %616 = vmatpush.bf16.msra.mxu0 0
    %617 = vmatpush.bf16.msra.mxu0 0
    %618 = vmatpush.bf16.msra.mxu0 %v522
    %619 = vmatpush.bf16.msra.mxu0 %v514
    %620 = vmatpush.bf16.msra.mxu0 %v506
    %621 = vmatpush.bf16.msra.mxu0 %v498
    %622 = vmatmul.bf16.gmra.mxu0 %v560
    %v623 = vpop.f32.mrf.mxu0
    %v624 = vadd.f32 0.0, %v623
    %v625 = vpop.f32.mrf.mxu0
    %626 = vdwg.mxu0
    %627 = vmatpush.bf16.msra.mxu0 0
    %628 = vmatpush.bf16.msra.mxu0 0
    %629 = vmatpush.bf16.msra.mxu0 0
    %630 = vmatpush.bf16.msra.mxu0 0
    %631 = vmatpush.bf16.msra.mxu0 %v523
    %632 = vmatpush.bf16.msra.mxu0 %v515
    %633 = vmatpush.bf16.msra.mxu0 %v507
    %634 = vmatpush.bf16.msra.mxu0 %v499
    %635 = vmatmul.bf16.gmra.mxu0 %v560
    %v636 = vpop.f32.mrf.mxu0
    %v637 = vadd.f32 0.0, %v636
    %v638 = vpop.f32.mrf.mxu0
    %639 = vdwg.mxu0
    %640 = vmatpush.bf16.msra.mxu0 0
    %641 = vmatpush.bf16.msra.mxu0 0
    %642 = vmatpush.bf16.msra.mxu0 0
    %643 = vmatpush.bf16.msra.mxu0 0
    %644 = vmatpush.bf16.msra.mxu0 %v524
    %645 = vmatpush.bf16.msra.mxu0 %v516
    %646 = vmatpush.bf16.msra.mxu0 %v508
    %647 = vmatpush.bf16.msra.mxu0 %v500
    %648 = vmatmul.bf16.gmra.mxu0 %v560
    %v649 = vpop.f32.mrf.mxu0
    %v650 = vadd.f32 0.0, %v649
    %v651 = vpop.f32.mrf.mxu0
    %652 = vdwg.mxu0
    %653 = vmatpush.bf16.msra.mxu0 0
    %654 = vmatpush.bf16.msra.mxu0 0
    %655 = vmatpush.bf16.msra.mxu0 0
    %656 = vmatpush.bf16.msra.mxu0 0
    %657 = vmatpush.bf16.msra.mxu0 %v525
    %658 = vmatpush.bf16.msra.mxu0 %v517
    %659 = vmatpush.bf16.msra.mxu0 %v509
    %660 = vmatpush.bf16.msra.mxu0 %v501
    %661 = vmatmul.bf16.gmra.mxu0 %v560
    %v662 = vpop.f32.mrf.mxu0
    %v663 = vadd.f32 0.0, %v662
    %v664 = vpop.f32.mrf.mxu0
    %665 = vdwg.mxu0
    %v674 = vrot.slane %v585, 6
    %v675 = vrot.slane %v598, 4
    %v676 = vrot.slane %v611, 2
    %v677 = vrot.slane %v637, 6
    %v678 = vrot.slane %v650, 4
    %v679 = vrot.slane %v663, 2
    %vm680 = vcmask 1041408
    %v681 = vsel %vm680, %v572, %v674
    %vm682 = vcmask 1045508
    %v683 = vsel %vm682, %v675, %v676
    %v684 = vsel %vm336, %v681, %v683
    %v685 = vsel %vm680, %v624, %v677
    %v686 = vsel %vm682, %v678, %v679
    %v687 = vsel %vm336, %v685, %v686
    %v690 = vmul.f32 %v19, %v684
    %v691 = vmul.f32 %v20, %v687
    %692 = vst [vmem:[#allocation2] sm:$0xff] %v690
    %693 = vst [vmem:[#allocation2 + $0x8] sm:$0xff] %v691
    // Predicated region
    $region18: #{tpu_custom_call.1} parent=1 // pred_check
      _
    $region19: #{tpu_custom_call.1} parent=1 // pred_check_branch
      %695 = sbr.rel (0) target = $region21
    $region20: #{tpu_custom_call.1} parent=1 // pred_region
      %697 = vsyncadd [#allocation3], 0
      %s699 = sshll.u32 [#allocation2], 4
      %s700 = int_to_ptr.vmem [resolvable:$true] %s699
      %s701 = sshll.u32 %s4, 4
      %s702 = int_to_ptr.hbm [resolvable:$true] %s701
      %704 = dma.vmem_to_hbm [thread:$0]  %s700, 256, %s702, [#allocation3]
    $region21: #{tpu_custom_call.1} parent=1 // pred_fallthru
      _
    // Predicated region
    $region22: #{tpu_custom_call.1} parent=1 // pred_check
      _
    $region23: #{tpu_custom_call.1} parent=1 // pred_check_branch
      %706 = sbr.rel (0) target = $region25
    $region24: #{tpu_custom_call.1} parent=1 // pred_region
      %708 = dma.done [#allocation3], 256
    $region25: #{tpu_custom_call.1} parent=1 // pred_fallthru
      _
    %709 = vsyncpa [#allocation3], 1

</llo_original>
